<compile_context>
chip_gen: v5e
topology: v5e:2x2
jax: 0.10.0
libtpu: 0.0.40
codegen_flags: <defaults>
</compile_context>

<pallas_src>
import jax
import jax.numpy as jnp
from jax.experimental import pallas as pl
from jax.experimental.pallas import tpu as pltpu

_LANE = 128          # lane width: last dim of the kernel block
_BLOCK_ROWS = 4096   # rows per tile -> 2 MiB f32/tile, 8 MiB double-buffered


def _round_up(x: int, m: int) -> int:
    return ((x + m - 1) // m) * m


def _sigmoid_kernel(bias_ref, x_ref, o_ref):
    # bias_ref: SMEM (1,) scalar; x_ref/o_ref: VMEM [TB, 128]
    z = x_ref[...].astype(jnp.float32) + bias_ref[0]
    o_ref[...] = jax.nn.sigmoid(z).astype(o_ref.dtype)


def _identity_kernel(bias_ref, x_ref, o_ref):
    z = x_ref[...].astype(jnp.float32) + bias_ref[0]
    o_ref[...] = z.astype(o_ref.dtype)


def prediction_layer(inputs: jax.Array,
                     bias: jax.Array | None = None,
                     task: str = "binary",
                     use_bias: bool = True) -> jax.Array:
    """Pallas equivalent of PredictionLayer.forward.

    inputs: arbitrary-shaped logits (typically [batch, 1] or [batch, out_dim])
    bias:   scalar parameter of shape (1,) (ignored if use_bias=False)
    """
    if task not in ("binary", "regression", "multiclass"):
        raise ValueError("task must be binary,multiclass or regression")

    orig_shape = inputs.shape
    orig_dtype = inputs.dtype
    total = int(inputs.size)

    # ---- lane-dense repacking: flatten -> pad -> (rows_padded, 128) ----
    rows = -(-total // _LANE)                       # cdiv
    tb = min(_BLOCK_ROWS, _round_up(max(rows, 1), 8))
    rows_padded = _round_up(max(rows, 1), tb)
    padded_total = rows_padded * _LANE

    flat = inputs.reshape(-1)
    if padded_total != total:
        flat = jnp.pad(flat, (0, padded_total - total))
    x2d = flat.reshape(rows_padded, _LANE)

    if use_bias:
        if bias is None:
            raise ValueError("use_bias=True requires a bias parameter")
        b = bias.reshape(1).astype(jnp.float32)
    else:
        b = jnp.zeros((1,), jnp.float32)

    kernel = _sigmoid_kernel if task == "binary" else _identity_kernel
    grid = (rows_padded // tb,)

    out2d = pl.pallas_call(
        kernel,
        out_shape=jax.ShapeDtypeStruct((rows_padded, _LANE), orig_dtype),
        grid_spec=pltpu.PrefetchScalarGridSpec(
            num_scalar_prefetch=1,                 # bias -> SMEM
            grid=grid,
            in_specs=[pl.BlockSpec((tb, _LANE), lambda i, b_ref: (i, 0))],
            out_specs=pl.BlockSpec((tb, _LANE), lambda i, b_ref: (i, 0)),
        ),
        compiler_params=pltpu.CompilerParams(
            dimension_semantics=("parallel",),     # shard rows across TCs (v7x)
        ),
    )(b, x2d)

    return out2d.reshape(-1)[:total].reshape(orig_shape)


if __name__ == "__main__":
    key = jax.random.PRNGKey(0)

    # Shape consistent with "output of model's last layer" for a binary CTR
    # task: [batch, out_dim] with out_dim = 1 (lane-dense repacking handles it).
    B, D = 256, 1
    x = jax.random.normal(key, (B, D), dtype=jnp.float32)

    # 1) Parameter init matching the module: bias = zeros((1,))
    bias0 = jnp.zeros((1,), dtype=jnp.float32)
    out0 = jax.block_until_ready(prediction_layer(x, bias0, task="binary"))
    ref0 = jax.nn.sigmoid(x + bias0)
    assert out0.shape == x.shape and out0.dtype == x.dtype
    assert jnp.allclose(out0, ref0, atol=1e-6), "binary (zero bias) mismatch"

    # 2) Non-zero bias to exercise the bias path (deterministic constant).
    bias1 = jnp.full((1,), 0.25, dtype=jnp.float32)
    out1 = jax.block_until_ready(prediction_layer(x, bias1, task="binary"))
    ref1 = jax.nn.sigmoid(x + bias1)
    assert jnp.allclose(out1, ref1, atol=1e-6), "binary (nonzero bias) mismatch"

    # 3) Regression task: identity activation after bias add.
    out2 = jax.block_until_ready(prediction_layer(x, bias1, task="regression"))
    ref2 = x + bias1
    assert jnp.allclose(out2, ref2, atol=1e-6), "regression mismatch"

    print("KERNEL_OK")
</pallas_src>

<mosaic_0001>
module attributes {stable_mosaic.version = 11 : i64} {
  func.func @_sigmoid_kernel(%arg0: i32, %arg1: memref<1xf32, #tpu.memory_space<smem>>, %arg2: memref<8x128xf32, #tpu.memory_space<vmem>>, %arg3: memref<8x128xf32, #tpu.memory_space<vmem>>) attributes {dimension_semantics = [#tpu.dimension_semantics<parallel>], iteration_bounds = array<i64: 1>, scalar_prefetch = 1 : i64, scratch_operands = 0 : i64, tpu.core_type = #tpu.core_type<tc>, window_params = [{transform_indices = @transform_0, window_bounds = array<i64: 8, 128>}, {transform_indices = @transform_1, window_bounds = array<i64: 8, 128>}]} {
    %c0 = arith.constant 0 : index
    %c0_0 = arith.constant 0 : index
    %0 = vector.load %arg2[%c0, %c0_0] : memref<8x128xf32, #tpu.memory_space<vmem>>, vector<8x128xf32>
    %c0_1 = arith.constant 0 : index
    %1 = memref.load %arg1[%c0_1] : memref<1xf32, #tpu.memory_space<smem>>
    %2 = vector.broadcast %1 : f32 to vector<8x128xf32>
    %3 = arith.addf %0, %2 : vector<8x128xf32>
    %4 = arith.negf %3 : vector<8x128xf32>
    %5 = math.exp %4 : vector<8x128xf32>
    %cst = arith.constant 1.000000e+00 : f32
    %6 = vector.broadcast %cst : f32 to vector<8x128xf32>
    %7 = arith.addf %6, %5 : vector<8x128xf32>
    %8 = arith.divf %6, %7 : vector<8x128xf32>
    %c0_2 = arith.constant 0 : index
    %c0_3 = arith.constant 0 : index
    %9 = vector.load %arg3[%c0_2, %c0_3] : memref<8x128xf32, #tpu.memory_space<vmem>>, vector<8x128xf32>
    tpu.vector_store %arg3[%c0_2, %c0_3], %8 {strides = array<i32>} : memref<8x128xf32, #tpu.memory_space<vmem>>, vector<8x128xf32>,
    return
  }
  func.func @transform_0(%arg0: i32, %arg1: memref<1xf32, #tpu.memory_space<smem>>) -> (i32, i32) {
    %c0_i32 = arith.constant 0 : i32
    %c0_i32_0 = arith.constant 0 : i32
    return %arg0, %c0_i32 : i32, i32
  }
  func.func @transform_1(%arg0: i32, %arg1: memref<1xf32, #tpu.memory_space<smem>>) -> (i32, i32) {
    %c0_i32 = arith.constant 0 : i32
    %c0_i32_0 = arith.constant 0 : i32
    return %arg0, %c0_i32 : i32, i32
  }
}

</mosaic_0001>

<llo_original>
// kernel: tpu_custom_call.1
$region0: #{tpu_custom_call.1}
  #allocation0 [shape = 'u32[]', space=smem, size = 0x4, offset = 0x4, fixed_abs, tag = 'smem constant byte address 0x4 - core index']
  #allocation1 [shape = 'u32[72,128]{1,0:T(1,128)}', space=vmem, size = 0x9000, scoped, tag = 'internal scratch']
  #allocation2 [shape = 's32[1]{0}', space=sflag, size = 0x4, scoped, tag = 'scoped memory for tpu_custom_call.1']
  #allocation3 [shape = 'f32[1]{0:T(128)S(6)}', space=smem, size = 0x200, scoped, tag = 'prefetched SMEM operand 0']
  %s0 = inlined_call_operand.<no memory space> [shape: f32[1], index: 0, kind: input, shape index: {}]
  %s1 = inlined_call_operand.hbm [shape: f32[8,128], index: 1, kind: input, shape index: {}]
  %s2 = inlined_call_operand.hbm [shape: f32[8,128], index: 2, kind: output, shape index: {}]
  %s3 = sld [smem:[#allocation0]]
  $region18: #{tpu_custom_call.1} parent=0
    _
  %s5 = ssub.s32 1, %s3
  %s6 = scalar_select 0, %s5, %s3
  %7 = sst [smem:[#allocation3]] %s0
  $region1: #{tpu_custom_call.1} parent=0
    #allocation4 [shape = 'u8[4096]{0}', space=vmem, size = 0x1000, scoped, tag = 'input window, operand 1, single buffered']
    #allocation5 [shape = 's32[1]{0}', space=sflag, size = 0x4, scoped, tag = 'scoped memory for tpu_custom_call.1']
    #allocation6 [shape = 's32[1]{0}', space=sflag, size = 0x4, scoped, tag = 'scoped memory for tpu_custom_call.1']
    #allocation7 [shape = 'u8[4096]{0}', space=vmem, size = 0x1000, scoped, tag = 'output window, operand 0, single buffered']
    %8 = vsyncpa [#allocation5], 0
    %9 = vsyncpa [#allocation6], 0
    // Predicated region
    $region2: #{tpu_custom_call.1} parent=1 // pred_check
      _
    $region3: #{tpu_custom_call.1} parent=1 // pred_check_branch
      %11 = sbr.rel (0) target = $region5
    $region4: #{tpu_custom_call.1} parent=1 // pred_region
      %13 = vsyncadd [#allocation5], 0
      %s15 = sshll.u32 %s1, 4
      %s16 = int_to_ptr.hbm [resolvable:$true] %s15
      %s17 = sshll.u32 [#allocation4], 4
      %s18 = int_to_ptr.vmem [resolvable:$true] %s17
      %20 = dma.hbm_to_vmem [thread:$0]  %s16, 128, %s18, [#allocation5]
    $region5: #{tpu_custom_call.1} parent=1 // pred_fallthru
      _
    // Predicated region
    $region6: #{tpu_custom_call.1} parent=1 // pred_check
      _
    $region7: #{tpu_custom_call.1} parent=1 // pred_check_branch
      %22 = sbr.rel (0) target = $region9
    $region8: #{tpu_custom_call.1} parent=1 // pred_region
      %24 = dma.done [#allocation5], 128
    $region9: #{tpu_custom_call.1} parent=1 // pred_fallthru
      _
    %v25 = vld [vmem:[#allocation4] sm:$0xff]
    %s26 = sld [smem:[#allocation3]]
    %v27 = vstv %s26
    %v28 = vadd.f32 %v25, %v27
    %v29 = vxor.u32 %v28, 2147483648
    %v30 = vmul.f32 %v29, 1.442695
    %v31 = vpow.pop %v30
    %v32 = vadd.f32 %v31, 1.0
    %v33 = vrcp.pop %v32
    %v34 = vmul.f32 %v32, %v33
    %v35 = vsub.f32 1.0, %v34
    %v36 = vmul.f32 %v33, %v35
    %v37 = vadd.f32 %v33, %v36
    %vm38 = vweird.f32 %v32
    %vm39 = vweird.f32 %v33
    %vm40 = vmor %vm38, %vm39
    %v41 = vsel %vm40, %v33, %v37
    %v42 = vand.u32 2147483647, %v32
    %vm43 = vcmp.eq.f32.partialorder %v42, 8.507059e+37
    %v44 = vand.u32 %v32, 2147483648
    %v45 = vor.u32 1.1754944e-38, %v44
    %v46 = vsel %vm43, %v45, %v41
    %v47 = vmul.f32 1.0, %v46
    %48 = vst [vmem:[#allocation7] sm:$0xff] %v47
    // Predicated region
    $region10: #{tpu_custom_call.1} parent=1 // pred_check
      _
    $region11: #{tpu_custom_call.1} parent=1 // pred_check_branch
      %50 = sbr.rel (0) target = $region13
    $region12: #{tpu_custom_call.1} parent=1 // pred_region
      %52 = vsyncadd [#allocation6], 0
      %s54 = sshll.u32 [#allocation7], 4
      %s55 = int_to_ptr.vmem [resolvable:$true] %s54
      %s56 = sshll.u32 %s2, 4
      %s57 = int_to_ptr.hbm [resolvable:$true] %s56
      %59 = dma.vmem_to_hbm [thread:$0]  %s55, 128, %s57, [#allocation6]
    $region13: #{tpu_custom_call.1} parent=1 // pred_fallthru
      _
    // Predicated region
    $region14: #{tpu_custom_call.1} parent=1 // pred_check
      _
    $region15: #{tpu_custom_call.1} parent=1 // pred_check_branch
      %61 = sbr.rel (0) target = $region17
    $region16: #{tpu_custom_call.1} parent=1 // pred_region
      %63 = dma.done [#allocation6], 128
    $region17: #{tpu_custom_call.1} parent=1 // pred_fallthru
      _
    %64 = vsyncpa [#allocation5], 1
    %65 = vsyncpa [#allocation6], 1

</llo_original>
